<compile_context>
chip_gen: v6e
topology: v6e:2x2x1
jax: 0.10.0
libtpu: 0.0.40
codegen_flags: <defaults>
</compile_context>

<pallas_src>
import functools

import jax
import jax.numpy as jnp
from jax.experimental import pallas as pl
from jax.experimental.pallas import tpu as pltpu

LANE = 128
SUB = 8
CHUNK = LANE * SUB                      # 1024 batch elems = one full (8,128) f32 tile
_BYTES_PER_ELEM = 2 * (3 + 1) * 4       # 2 buffers x (3 input planes + 1 output) x f32


@functools.lru_cache(maxsize=1)
def _vmem_plan():
    """Return (bytes budgeted for double-buffered x/y tiles, vmem_limit_bytes)."""
    try:
        cap = pltpu.get_tpu_info().vmem_capacity_bytes
    except Exception:
        cap = 64 * 1024 * 1024          # conservative fallback: v7x's 64 MiB / TC
    # Scoped limit: 48 MiB on v7x (64 MiB physical), 96 MiB on v5e/v6e (128 MiB).
    vmem_limit = min((3 * cap) // 4, 96 * 1024 * 1024)
    # Give half of it to the double-buffered x/y tiles, rest is compiler headroom.
    return vmem_limit // 2, vmem_limit


def mlp_kernel(params_ref, x_ref, o_ref):
    # params_ref (SMEM, f32[11]):
    #   [0..5]  w1[k, j] at 2*k + j   (in=3, out=2, row-major)
    #   [6..7]  b1[j]
    #   [8..9]  w2[k, 0]
    #   [10]    b2[0]
    # x_ref: (3, S, 128) feature planes, batch packed densely on (sublane, lane).
    x0 = x_ref[0].astype(jnp.float32)    # (S, 128)
    x1 = x_ref[1].astype(jnp.float32)
    x2 = x_ref[2].astype(jnp.float32)

    # Layer 1: hidden_j = sum_k x_k * w1[k, j] + b1[j]  -- pure VPU FMAs, no MXU.
    h0 = x0 * params_ref[0] + x1 * params_ref[2] + x2 * params_ref[4] + params_ref[6]
    h1 = x0 * params_ref[1] + x1 * params_ref[3] + x2 * params_ref[5] + params_ref[7]

    a0 = jnp.maximum(h0, 0.0)            # ReLU on the VPU, f32 throughout (v5e-safe)
    a1 = jnp.maximum(h1, 0.0)

    # Layer 2: y = a0 * w2[0] + a1 * w2[1] + b2  -> dense (S, 128) unmasked store.
    y = a0 * params_ref[8] + a1 * params_ref[9] + params_ref[10]
    o_ref[...] = y.astype(o_ref.dtype)


@functools.partial(jax.jit, static_argnames=("max_tile_elems",))
def mlp_forward(x, w1, b1, w2, b2, *, max_tile_elems=None):
    """y = relu(x @ w1 + b1) @ w2 + b2, batch packed onto (sublane, lane)."""
    B, in_dim = x.shape
    assert in_dim == 3 and w1.shape == (3, 2) and w2.shape == (2, 1)

    tile_budget, vmem_limit = _vmem_plan()
    if max_tile_elems is None:
        max_tile_elems = tile_budget // _BYTES_PER_ELEM
    max_tile_elems = max(CHUNK, (max_tile_elems // CHUNK) * CHUNK)

    # Pad batch to a whole number of (8,128) tiles, then pick balanced tiles.
    padded_B = pl.cdiv(B, CHUNK) * CHUNK
    grid = pl.cdiv(padded_B, max_tile_elems)
    tile = pl.cdiv(pl.cdiv(padded_B, grid), CHUNK) * CHUNK   # multiple of 1024
    padded_B = grid * tile
    s_total = padded_B // LANE           # total sublane rows per feature plane
    s_tile = tile // LANE                # sublane rows per grid step (multiple of 8)

    # Layout prologue (fused under jit): feature-major planes, batch dense on
    # (sublane, lane).  No dtype cast here -- the kernel upcasts on load.
    x_planes = jnp.pad(x.T, ((0, 0), (0, padded_B - B))).reshape(3, s_total, LANE)

    # Pack all 11 parameters into one flat f32 array kept resident in SMEM.
    params = jnp.concatenate(
        [w1.reshape(-1), b1.reshape(-1), w2.reshape(-1), b2.reshape(-1)]
    ).astype(jnp.float32)

    y_planes = pl.pallas_call(
        mlp_kernel,
        out_shape=jax.ShapeDtypeStruct((s_total, LANE), x.dtype),
        grid=(grid,),
        in_specs=[
            pl.BlockSpec(memory_space=pltpu.MemorySpace.SMEM),        # params (SMEM)
            pl.BlockSpec((3, s_tile, LANE), lambda i: (0, i, 0)),     # dense x planes
        ],
        out_specs=pl.BlockSpec((s_tile, LANE), lambda i: (i, 0)),     # dense y plane
        compiler_params=pltpu.CompilerParams(
            # NOTE: pltpu.CORE_PARALLEL would shard grid steps across v7x's two
            # TensorCores; kept "parallel" for portability (grid is often 1 and
            # v5e/v6e have a single TC), and the HBM roofline is shared anyway.
            dimension_semantics=("parallel",),
            vmem_limit_bytes=vmem_limit,
        ),
    )(params, x_planes)

    # Epilogue (fused under jit): back to the PyTorch (B, 1) layout, drop padding.
    return y_planes.reshape(padded_B)[:B].reshape(B, 1)


def init_params(key):
    # torch.nn.Linear default init: U(-1/sqrt(fan_in), +1/sqrt(fan_in)),
    # stored as (in, out) so the math is x @ W + b (== torch's x @ W.T + b).
    k1, k2, k3, k4 = jax.random.split(key, 4)
    bnd1 = 1.0 / jnp.sqrt(jnp.float32(3))
    bnd2 = 1.0 / jnp.sqrt(jnp.float32(2))
    w1 = jax.random.uniform(k1, (3, 2), jnp.float32, -bnd1, bnd1)
    b1 = jax.random.uniform(k2, (1, 2), jnp.float32, -bnd1, bnd1)
    w2 = jax.random.uniform(k3, (2, 1), jnp.float32, -bnd2, bnd2)
    b2 = jax.random.uniform(k4, (1, 1), jnp.float32, -bnd2, bnd2)
    return w1, b1, w2, b2


def _ref(x, w1, b1, w2, b2):
    return jnp.maximum(x @ w1 + b1, 0.0) @ w2 + b2


if __name__ == "__main__":
    key = jax.random.PRNGKey(0)
    kx, kp, kx2 = jax.random.split(key, 3)
    w1, b1, w2, b2 = init_params(kp)

    # Small shape matching the module spec (batch=8 rows of 3 features) -> grid=1.
    x = jax.random.normal(kx, (8, 3), jnp.float32)
    out = jax.block_until_ready(mlp_forward(x, w1, b1, w2, b2))
    assert out.shape == (8, 1)
    assert jnp.allclose(out, _ref(x, w1, b1, w2, b2), atol=1e-5, rtol=1e-5)

    # Exercise batch padding + a multi-step grid by forcing a tiny 1024-elem tile
    # (3000 rows -> 3 grid steps of (8,128) tiles), still a small test shape.
    x2 = jax.random.normal(kx2, (3000, 3), jnp.float32)
    out2 = jax.block_until_ready(
        mlp_forward(x2, w1, b1, w2, b2, max_tile_elems=1024)
    )
    assert out2.shape == (3000, 1)
    assert jnp.allclose(out2, _ref(x2, w1, b1, w2, b2), atol=1e-5, rtol=1e-5)

    print("KERNEL_OK")
</pallas_src>

<mosaic_0001>
module attributes {stable_mosaic.version = 11 : i64} {
  func.func @mlp_kernel(%arg0: i32, %arg1: memref<11xf32, #tpu.memory_space<smem>>, %arg2: memref<3x8x128xf32, #tpu.memory_space<vmem>>, %arg3: memref<8x128xf32, #tpu.memory_space<vmem>>) attributes {dimension_semantics = [#tpu.dimension_semantics<parallel>], iteration_bounds = array<i64: 1>, scalar_prefetch = 0 : i64, scratch_operands = 0 : i64, tpu.core_type = #tpu.core_type<tc>, window_params = [{transform_indices = @transform_0, window_bounds = array<i64: 11>}, {transform_indices = @transform_1, window_bounds = array<i64: 3, 8, 128>}, {transform_indices = @transform_2, window_bounds = array<i64: 8, 128>}]} {
    %c0 = arith.constant 0 : index
    %c0_0 = arith.constant 0 : index
    %c0_1 = arith.constant 0 : index
    %0 = vector.load %arg2[%c0, %c0_0, %c0_1] : memref<3x8x128xf32, #tpu.memory_space<vmem>>, vector<1x8x128xf32>
    %1 = vector.shape_cast %0 : vector<1x8x128xf32> to vector<8x128xf32>
    %c1 = arith.constant 1 : index
    %c0_2 = arith.constant 0 : index
    %c0_3 = arith.constant 0 : index
    %2 = vector.load %arg2[%c1, %c0_2, %c0_3] : memref<3x8x128xf32, #tpu.memory_space<vmem>>, vector<1x8x128xf32>
    %3 = vector.shape_cast %2 : vector<1x8x128xf32> to vector<8x128xf32>
    %c2 = arith.constant 2 : index
    %c0_4 = arith.constant 0 : index
    %c0_5 = arith.constant 0 : index
    %4 = vector.load %arg2[%c2, %c0_4, %c0_5] : memref<3x8x128xf32, #tpu.memory_space<vmem>>, vector<1x8x128xf32>
    %5 = vector.shape_cast %4 : vector<1x8x128xf32> to vector<8x128xf32>
    %c0_6 = arith.constant 0 : index
    %6 = memref.load %arg1[%c0_6] : memref<11xf32, #tpu.memory_space<smem>>
    %7 = vector.broadcast %6 : f32 to vector<8x128xf32>
    %8 = arith.mulf %1, %7 : vector<8x128xf32>
    %c2_7 = arith.constant 2 : index
    %9 = memref.load %arg1[%c2_7] : memref<11xf32, #tpu.memory_space<smem>>
    %10 = vector.broadcast %9 : f32 to vector<8x128xf32>
    %11 = arith.mulf %3, %10 : vector<8x128xf32>
    %12 = arith.addf %8, %11 : vector<8x128xf32>
    %c4 = arith.constant 4 : index
    %13 = memref.load %arg1[%c4] : memref<11xf32, #tpu.memory_space<smem>>
    %14 = vector.broadcast %13 : f32 to vector<8x128xf32>
    %15 = arith.mulf %5, %14 : vector<8x128xf32>
    %16 = arith.addf %12, %15 : vector<8x128xf32>
    %c6 = arith.constant 6 : index
    %17 = memref.load %arg1[%c6] : memref<11xf32, #tpu.memory_space<smem>>
    %18 = vector.broadcast %17 : f32 to vector<8x128xf32>
    %19 = arith.addf %16, %18 : vector<8x128xf32>
    %c1_8 = arith.constant 1 : index
    %20 = memref.load %arg1[%c1_8] : memref<11xf32, #tpu.memory_space<smem>>
    %21 = vector.broadcast %20 : f32 to vector<8x128xf32>
    %22 = arith.mulf %1, %21 : vector<8x128xf32>
    %c3 = arith.constant 3 : index
    %23 = memref.load %arg1[%c3] : memref<11xf32, #tpu.memory_space<smem>>
    %24 = vector.broadcast %23 : f32 to vector<8x128xf32>
    %25 = arith.mulf %3, %24 : vector<8x128xf32>
    %26 = arith.addf %22, %25 : vector<8x128xf32>
    %c5 = arith.constant 5 : index
    %27 = memref.load %arg1[%c5] : memref<11xf32, #tpu.memory_space<smem>>
    %28 = vector.broadcast %27 : f32 to vector<8x128xf32>
    %29 = arith.mulf %5, %28 : vector<8x128xf32>
    %30 = arith.addf %26, %29 : vector<8x128xf32>
    %c7 = arith.constant 7 : index
    %31 = memref.load %arg1[%c7] : memref<11xf32, #tpu.memory_space<smem>>
    %32 = vector.broadcast %31 : f32 to vector<8x128xf32>
    %33 = arith.addf %30, %32 : vector<8x128xf32>
    %cst = arith.constant 0.000000e+00 : f32
    %34 = vector.broadcast %cst : f32 to vector<8x128xf32>
    %35 = arith.maximumf %19, %34 : vector<8x128xf32>
    %cst_9 = arith.constant 0.000000e+00 : f32
    %36 = vector.broadcast %cst_9 : f32 to vector<8x128xf32>
    %37 = arith.maximumf %33, %36 : vector<8x128xf32>
    %c8 = arith.constant 8 : index
    %38 = memref.load %arg1[%c8] : memref<11xf32, #tpu.memory_space<smem>>
    %39 = vector.broadcast %38 : f32 to vector<8x128xf32>
    %40 = arith.mulf %35, %39 : vector<8x128xf32>
    %c9 = arith.constant 9 : index
    %41 = memref.load %arg1[%c9] : memref<11xf32, #tpu.memory_space<smem>>
    %42 = vector.broadcast %41 : f32 to vector<8x128xf32>
    %43 = arith.mulf %37, %42 : vector<8x128xf32>
    %44 = arith.addf %40, %43 : vector<8x128xf32>
    %c10 = arith.constant 10 : index
    %45 = memref.load %arg1[%c10] : memref<11xf32, #tpu.memory_space<smem>>
    %46 = vector.broadcast %45 : f32 to vector<8x128xf32>
    %47 = arith.addf %44, %46 : vector<8x128xf32>
    %c0_10 = arith.constant 0 : index
    %c0_11 = arith.constant 0 : index
    %48 = vector.load %arg3[%c0_10, %c0_11] : memref<8x128xf32, #tpu.memory_space<vmem>>, vector<8x128xf32>
    tpu.vector_store %arg3[%c0_10, %c0_11], %47 {strides = array<i32>} : memref<8x128xf32, #tpu.memory_space<vmem>>, vector<8x128xf32>,
    return
  }
  func.func @transform_0(%arg0: i32) -> i32 {
    %c0_i32 = arith.constant 0 : i32
    %c0_i32_0 = arith.constant 0 : i32
    return %c0_i32 : i32
  }
  func.func @transform_1(%arg0: i32) -> (i32, i32, i32) {
    %c0_i32 = arith.constant 0 : i32
    %c0_i32_0 = arith.constant 0 : i32
    %c0_i32_1 = arith.constant 0 : i32
    return %c0_i32, %arg0, %c0_i32_0 : i32, i32, i32
  }
  func.func @transform_2(%arg0: i32) -> (i32, i32) {
    %c0_i32 = arith.constant 0 : i32
    %c0_i32_0 = arith.constant 0 : i32
    return %arg0, %c0_i32 : i32, i32
  }
}

</mosaic_0001>

<llo_original>
// kernel: mlp_forward.1
$region0: #{mlp_forward.1}
  #allocation0 [shape = 'u32[]', space=smem, size = 0x4, offset = 0x4, fixed_abs, tag = 'smem constant byte address 0x4 - core index']
  #allocation1 [shape = 'u32[144,128]{1,0:T(1,128)}', space=vmem, size = 0x12000, scoped, tag = 'internal scratch']
  %s0 = inlined_call_operand.vmem [shape: f32[11], index: 0, kind: input, shape index: {}]
  %s1 = inlined_call_operand.vmem [shape: f32[3,8,128], index: 1, kind: input, shape index: {}]
  %s2 = inlined_call_operand.vmem [shape: f32[8,128], index: 2, kind: output, shape index: {}]
  %s3 = sld [smem:[#allocation0]]
  $region22: #{mlp_forward.1} parent=0
    _
  %s5 = ssub.s32 1, %s3
  %s6 = scalar_select 0, %s5, %s3
  $region1: #{mlp_forward.1} parent=0
    #allocation2 [shape = 'u8[512]{0}', space=smem, size = 0x200, scoped, tag = 'input window, operand 0, single buffered']
    #allocation3 [shape = 's32[1]{0}', space=sflag, size = 0x4, scoped, tag = 'scoped memory for mlp_forward.1']
    %7 = vsyncpa [#allocation3], 0
    // Predicated region
    $region2: #{mlp_forward.1} parent=1 // pred_check
      _
    $region3: #{mlp_forward.1} parent=1 // pred_check_branch
      %9 = sbr.rel (0) target = $region5
    $region4: #{mlp_forward.1} parent=1 // pred_region
      %s11 = ssub.s32 16, 16
      %12 = vsyncadd [#allocation3], %s11
      %s14 = sshll.u32 %s0, 4
      %s15 = int_to_ptr.vmem [resolvable:$true] %s14
      %17 = dma.vmem_to_smem %s15, 16, [#allocation2], [#allocation3]
    $region5: #{mlp_forward.1} parent=1 // pred_fallthru
      _
    // Predicated region
    $region6: #{mlp_forward.1} parent=1 // pred_check
      _
    $region7: #{mlp_forward.1} parent=1 // pred_check_branch
      %19 = sbr.rel (0) target = $region9
    $region8: #{mlp_forward.1} parent=1 // pred_region
      _
    $region9: #{mlp_forward.1} parent=1 // pred_fallthru
      _
    // Predicated region
    $region10: #{mlp_forward.1} parent=1 // pred_check
      _
    $region11: #{mlp_forward.1} parent=1 // pred_check_branch
      %21 = sbr.rel (0) target = $region13
    $region12: #{mlp_forward.1} parent=1 // pred_region
      %22 = dma.done [#allocation3], 16
    $region13: #{mlp_forward.1} parent=1 // pred_fallthru
      _
    %23 = sfence
    %v24 = vld [vmem:[%s1] sm:$0xff]
    %s25 = scalar_lea.vmem %s1, 8
    %v26 = vld [vmem:[%s25] sm:$0xff]
    %s27 = scalar_lea.vmem %s1, 16
    %v28 = vld [vmem:[%s27] sm:$0xff]
    %s29 = sld [smem:[#allocation2]]
    %v30 = vstv %s29
    %v31 = vmul.f32 %v24, %v30
    %s32 = sld [smem:[#allocation2 + $0x2]]
    %v33 = vstv %s32
    %v34 = vmul.f32 %v26, %v33
    %v35 = vadd.f32 %v31, %v34
    %s36 = sld [smem:[#allocation2 + $0x4]]
    %v37 = vstv %s36
    %v38 = vmul.f32 %v28, %v37
    %v39 = vadd.f32 %v35, %v38
    %s40 = sld [smem:[#allocation2 + $0x6]]
    %v41 = vstv %s40
    %v42 = vadd.f32 %v39, %v41
    %s43 = sld [smem:[#allocation2 + $0x1]]
    %v44 = vstv %s43
    %v45 = vmul.f32 %v24, %v44
    %s46 = sld [smem:[#allocation2 + $0x3]]
    %v47 = vstv %s46
    %v48 = vmul.f32 %v26, %v47
    %v49 = vadd.f32 %v45, %v48
    %s50 = sld [smem:[#allocation2 + $0x5]]
    %v51 = vstv %s50
    %v52 = vmul.f32 %v28, %v51
    %v53 = vadd.f32 %v49, %v52
    %s54 = sld [smem:[#allocation2 + $0x7]]
    %v55 = vstv %s54
    %v56 = vadd.f32 %v53, %v55
    %v57 = vmax.f32 %v42, 0.0
    %v58 = vmax.f32 %v56, 0.0
    %s59 = sld [smem:[#allocation2 + $0x8]]
    %v60 = vstv %s59
    %v61 = vmul.f32 %v57, %v60
    %s62 = sld [smem:[#allocation2 + $0x9]]
    %v63 = vstv %s62
    %v64 = vmul.f32 %v58, %v63
    %v65 = vadd.f32 %v61, %v64
    %s66 = sld [smem:[#allocation2 + $0xa]]
    %v67 = vstv %s66
    %v68 = vadd.f32 %v65, %v67
    %69 = vst [vmem:[%s2] sm:$0xff] %v68
    // Predicated region
    $region14: #{mlp_forward.1} parent=1 // pred_check
      _
    $region15: #{mlp_forward.1} parent=1 // pred_check_branch
      %71 = sbr.rel (0) target = $region17
    $region16: #{mlp_forward.1} parent=1 // pred_region
      _
    $region17: #{mlp_forward.1} parent=1 // pred_fallthru
      _
    // Predicated region
    $region18: #{mlp_forward.1} parent=1 // pred_check
      _
    $region19: #{mlp_forward.1} parent=1 // pred_check_branch
      %73 = sbr.rel (0) target = $region21
    $region20: #{mlp_forward.1} parent=1 // pred_region
      _
    $region21: #{mlp_forward.1} parent=1 // pred_fallthru
      _
    %74 = vsyncpa [#allocation3], 1

</llo_original>
